<compile_context>
chip_gen: v5e
topology: v5e:2x2
jax: 0.10.0
libtpu: 0.0.40
codegen_flags: <defaults>
</compile_context>

<pallas_src>
import functools

import jax
import jax.numpy as jnp
from jax.experimental import pallas as pl
from jax.experimental.pallas import tpu as pltpu

_LANE = 128


def _round_up(a: int, m: int) -> int:
    return ((a + m - 1) // m) * m


def _cheby_kernel(x_ref, w_ref, b_ref, o_ref, slab_ref, *,
                  degree: int, input_dim: int, i_pad: int,
                  matmul_dtype, compute_dtype):
    # x_ref:   (tb, I)        storage dtype (f32/bf16), upcast in-kernel
    # w_ref:   (degree*I_pad, tn)  matmul_dtype (zero rows in the pad region)
    # b_ref:   (1, tn)        f32   (T_0 contribution)
    # o_ref:   (tb, tn)       out dtype
    # slab_ref:(tb, degree*I_pad)  matmul_dtype VMEM scratch (persists over j)
    j = pl.program_id(1)

    # Build the degree-major basis slab once per batch tile; it only depends on
    # the batch-tile index i, so it is reused across all output tiles j.
    @pl.when(j == 0)
    def _build_slab():
        xt = jnp.tanh(x_ref[...].astype(jnp.float32)).astype(compute_dtype)
        if i_pad != input_dim:
            # Lane-pad once so every per-degree slab store is 128-aligned and
            # full width (pad columns hit zero weight rows -> contribute 0).
            pad = jnp.zeros((xt.shape[0], i_pad - input_dim), xt.dtype)
            xt = jnp.concatenate([xt, pad], axis=1)
        two_x = xt + xt                       # hoisted; reused every degree
        t_m2 = jnp.ones_like(xt)              # T_0 (never stored; folded in bias)
        t_m1 = xt                             # T_1
        slab_ref[:, pl.ds(0, i_pad)] = t_m1.astype(matmul_dtype)
        for d in range(2, degree + 1):
            t = two_x * t_m1 - t_m2
            slab_ref[:, pl.ds((d - 1) * i_pad, i_pad)] = t.astype(matmul_dtype)
            t_m2, t_m1 = t_m1, t

    # One big K = degree*I_pad matmul instead of `degree` tiny ones.
    acc = jnp.dot(slab_ref[...], w_ref[...], preferred_element_type=jnp.float32)
    o_ref[...] = (acc + b_ref[...]).astype(o_ref.dtype)


def prepare_cheby_params(cheby_coeffs, degree: int, *,
                         matmul_dtype=jnp.bfloat16, tile_o: int = 512):
    """Hoistable weight transform.

    (I, O, D+1) -> fused (degree*I_pad, O_pad) weight (zero rows/cols in the
    padding), a (1, O_pad) T_0 bias, and the padded sizes / output tile.
    For a persistent layer, call once at init and pass the result as
    `prepared=` to cheby_kan_layer_2.
    """
    input_dim, output_dim, dp1 = cheby_coeffs.shape
    assert dp1 == degree + 1
    coeffs = cheby_coeffs.astype(jnp.float32)

    # Lane-pad each degree slab so slab construction / MXU K tiling is aligned.
    i_pad = _round_up(input_dim, _LANE)

    # Output tiling: only tile (and hence pad) O when it is large enough that
    # the resident weight block matters (v7x has only 64 MiB VMEM).
    if output_dim > tile_o:
        tn = tile_o
        o_pad = _round_up(output_dim, tn)
    else:
        tn = output_dim
        o_pad = output_dim

    # T_0(x) == 1  ->  constant bias: sum_i coeffs[i, :, 0]
    bias = jnp.sum(coeffs[:, :, 0], axis=0)
    bias = jnp.pad(bias, (0, o_pad - output_dim)).reshape(1, o_pad)
    bias = bias.astype(jnp.float32)

    if degree == 0:
        w = jnp.zeros((i_pad, o_pad), matmul_dtype)   # unused by the kernel
    else:
        # Degree-major, input-major: row (d-1)*I_pad + i holds coeffs[i, :, d].
        w = jnp.transpose(coeffs[:, :, 1:], (2, 0, 1))               # (D, I, O)
        w = jnp.pad(w, ((0, 0), (0, i_pad - input_dim), (0, o_pad - output_dim)))
        w = w.reshape(degree * i_pad, o_pad).astype(matmul_dtype)
    return w, bias, i_pad, o_pad, tn


def _pick_tile_b(b_flat: int, input_dim: int, k_pad: int,
                 x_itemsize: int, matmul_itemsize: int) -> int:
    """Batch tile: ~2 MiB of x per tile, slab capped ~8 MiB, tile <= 4096."""
    tb_x = (2 * 1024 * 1024) // max(1, input_dim * x_itemsize)
    tb_slab = (8 * 1024 * 1024) // max(1, k_pad * matmul_itemsize)
    tb = max(256, min(tb_x, tb_slab, 4096))
    tb = min(tb, _round_up(b_flat, 16))
    # Keep >= 2 grid steps only for large batches (one per v7x TensorCore);
    # small batches use a single step to avoid per-step overhead on v5e/v6e.
    # TODO(synk): make this generation-aware via pltpu.get_tpu_info().
    if b_flat >= 1024 and _round_up(b_flat, tb) // tb < 2:
        tb = _round_up((b_flat + 1) // 2, 16)
    return max(16, _round_up(tb, 16))


def cheby_kan_layer_2(x, cheby_coeffs, *, degree: int,
                      matmul_dtype=jnp.bfloat16, compute_dtype=jnp.float32,
                      out_dtype=jnp.float32, tile_o: int = 512, prepared=None):
    """Forward pass of ChebyKANLayer_2.

    x:             any shape whose trailing dim is input_dim (flattened to (-1, I))
    cheby_coeffs:  (input_dim, output_dim, degree+1)   (PyTorch layout)
    returns:       (B_flat, output_dim) in out_dtype (default f32, like PyTorch)

    compute_dtype: recurrence dtype. Keep f32 on v5e (no bf16 VPU); bf16 halves
                   VALU work / slab vregs on v6e/v7x at bounded accuracy cost.
    prepared:      optional result of prepare_cheby_params() to hoist the
                   weight transform out of the per-call path.
    """
    input_dim, output_dim, dp1 = cheby_coeffs.shape
    assert dp1 == degree + 1

    # Keep x's storage dtype for the DMA; upcast inside the kernel.
    x_flat = jnp.reshape(x, (-1, input_dim))
    b_flat = x_flat.shape[0]

    if prepared is None:
        # NOTE(perf): hoist this (prepare_cheby_params) when weights are static.
        prepared = prepare_cheby_params(cheby_coeffs, degree,
                                        matmul_dtype=matmul_dtype, tile_o=tile_o)
    w, bias, i_pad, o_pad, tn = prepared

    if b_flat == 0:
        return jnp.zeros((0, output_dim), out_dtype)
    if degree == 0:
        # Output is just the T_0 bias broadcast over the batch.
        return jnp.broadcast_to(bias[:, :output_dim],
                                (b_flat, output_dim)).astype(out_dtype)

    k_pad = degree * i_pad
    tb = _pick_tile_b(b_flat, input_dim, k_pad,
                      x_flat.dtype.itemsize, jnp.dtype(matmul_dtype).itemsize)
    b_pad = _round_up(b_flat, tb)
    if b_pad != b_flat:
        x_flat = jnp.pad(x_flat, ((0, b_pad - b_flat), (0, 0)))

    grid = (b_pad // tb, o_pad // tn)

    cost = pl.CostEstimate(
        flops=int(2 * b_flat * k_pad * o_pad + 4 * b_flat * input_dim * degree),
        transcendentals=int(b_flat * input_dim),
        bytes_accessed=int(x_flat.size * x_flat.dtype.itemsize
                           + b_pad * o_pad * jnp.dtype(out_dtype).itemsize
                           + w.size * w.dtype.itemsize),
    )

    kernel = functools.partial(
        _cheby_kernel, degree=degree, input_dim=input_dim, i_pad=i_pad,
        matmul_dtype=matmul_dtype, compute_dtype=compute_dtype)

    # TODO(synk): single-buffer the grid-invariant weight/bias and deepen the x
    # pipeline via pipeline_mode=pl.Buffered(...) once that API is confirmed on
    # the target JAX version; skipped here for lowering-compat safety.
    out = pl.pallas_call(
        kernel,
        out_shape=jax.ShapeDtypeStruct((b_pad, o_pad), out_dtype),
        grid_spec=pltpu.PrefetchScalarGridSpec(
            num_scalar_prefetch=0,
            grid=grid,
            in_specs=[
                pl.BlockSpec((tb, input_dim), lambda i, j: (i, 0)),
                pl.BlockSpec((k_pad, tn), lambda i, j: (0, j)),
                pl.BlockSpec((1, tn), lambda i, j: (0, j)),
            ],
            out_specs=pl.BlockSpec((tb, tn), lambda i, j: (i, j)),
            scratch_shapes=[pltpu.VMEM((tb, k_pad), matmul_dtype)],
        ),
        compiler_params=pltpu.CompilerParams(
            # j ("arbitrary") must stay on one core: the slab scratch built at
            # j==0 is reused across output tiles of the same batch tile.
            dimension_semantics=("parallel", "arbitrary"),
            vmem_limit_bytes=64 * 1024 * 1024,
        ),
        cost_estimate=cost,
    )(x_flat, w, bias)

    out = out[:b_flat]
    if o_pad != output_dim:
        out = out[:, :output_dim]
    return out


def _reference(x, cheby_coeffs, degree):
    """Pure-JAX reference matching the PyTorch forward exactly (f32)."""
    input_dim = cheby_coeffs.shape[0]
    xf = jnp.reshape(x, (-1, input_dim)).astype(jnp.float32)
    xf = jnp.tanh(xf)
    cheby = [jnp.ones_like(xf)]
    if degree > 0:
        cheby.append(xf)
    for _ in range(2, degree + 1):
        cheby.append(2.0 * xf * cheby[-1] - cheby[-2])
    cheby = jnp.stack(cheby, axis=-1)  # (B, I, D+1)
    return jnp.einsum('bid,iod->bo', cheby, cheby_coeffs.astype(jnp.float32))


if __name__ == "__main__":
    # Module hyperparameters (small, deterministic).
    input_dim, output_dim, degree = 32, 16, 4

    key = jax.random.PRNGKey(0)
    k_coef, k_x1, k_x2 = jax.random.split(key, 3)

    # xavier_normal_ on an (I, O, D+1) tensor:
    #   fan_in = O*(D+1), fan_out = I*(D+1), std = sqrt(2/(fan_in+fan_out))
    fan_in = output_dim * (degree + 1)
    fan_out = input_dim * (degree + 1)
    std = (2.0 / (fan_in + fan_out)) ** 0.5
    cheby_coeffs = std * jax.random.normal(
        k_coef, (input_dim, output_dim, degree + 1), dtype=jnp.float32)

    # Small input: (2, 8, 32) -> flattens to (16, 32)  (single grid step).
    x_small = jax.random.normal(k_x1, (2, 8, input_dim), dtype=jnp.float32)
    # Larger batch: (4, 300, 32) -> (1200, 32)  (two batch tiles + padding).
    x_big = jax.random.normal(k_x2, (4, 300, input_dim), dtype=jnp.float32)

    fwd_bf16 = jax.jit(functools.partial(cheby_kan_layer_2, degree=degree))
    fwd_f32 = jax.jit(functools.partial(cheby_kan_layer_2, degree=degree,
                                        matmul_dtype=jnp.float32))

    for xin, b_expect in ((x_small, 16), (x_big, 1200)):
        y_bf16 = jax.block_until_ready(fwd_bf16(xin, cheby_coeffs))
        y_f32 = jax.block_until_ready(fwd_f32(xin, cheby_coeffs))
        y_ref = _reference(xin, cheby_coeffs, degree)
        assert y_bf16.shape == (b_expect, output_dim)
        assert y_f32.shape == (b_expect, output_dim)
        assert jnp.allclose(y_f32, y_ref, atol=1e-5, rtol=1e-5), "f32 mismatch vs reference"
        assert jnp.allclose(y_bf16, y_ref, atol=1e-2, rtol=1e-2), "bf16 mismatch vs reference"

    print("KERNEL_OK")
</pallas_src>

<mosaic_0001>
module attributes {stable_mosaic.version = 11 : i64} {
  func.func @_cheby_kernel(%arg0: i32, %arg1: i32, %arg2: memref<16x32xf32, #tpu.memory_space<vmem>>, %arg3: memref<512x16xbf16, #tpu.memory_space<vmem>>, %arg4: memref<1x16xf32, #tpu.memory_space<vmem>>, %arg5: memref<16x16xf32, #tpu.memory_space<vmem>>, %arg6: memref<16x512xbf16, #tpu.memory_space<vmem>>) attributes {dimension_semantics = [#tpu.dimension_semantics<parallel>, #tpu.dimension_semantics<arbitrary>], iteration_bounds = array<i64: 1, 1>, scalar_prefetch = 0 : i64, scratch_operands = 1 : i64, tpu.core_type = #tpu.core_type<tc>, window_params = [{transform_indices = @transform_0, window_bounds = array<i64: 16, 32>}, {transform_indices = @transform_1, window_bounds = array<i64: 512, 16>}, {transform_indices = @transform_2, window_bounds = array<i64: 1, 16>}, {transform_indices = @transform_3, window_bounds = array<i64: 16, 16>}]} {
    %c0_i32 = arith.constant 0 : i32
    %0 = arith.cmpi eq, %arg1, %c0_i32 : i32
    %1 = arith.extui %0 : i1 to i32
    %c0_i32_0 = arith.constant 0 : i32
    %2 = arith.cmpi ne, %1, %c0_i32_0 : i32
    scf.if %2 {
      %c0_8 = arith.constant 0 : index
      %c0_9 = arith.constant 0 : index
      %10 = vector.load %arg2[%c0_8, %c0_9] : memref<16x32xf32, #tpu.memory_space<vmem>>, vector<16x32xf32>
      %11 = math.tanh %10 : vector<16x32xf32>
      %cst_10 = arith.constant 0.000000e+00 : f32
      %12 = vector.broadcast %cst_10 : f32 to vector<16x96xf32>
      %13 = tpu.concatenate %11, %12 in 1 : vector<16x32xf32>, vector<16x96xf32> -> vector<16x128xf32>
      %14 = arith.addf %13, %13 : vector<16x128xf32>
      %cst_11 = arith.constant 1.000000e+00 : f32
      %15 = vector.broadcast %cst_11 : f32 to vector<16x128xf32>
      %16 = arith.truncf %13 : vector<16x128xf32> to vector<16x128xbf16>
      %c0_12 = arith.constant 0 : index
      %c0_13 = arith.constant 0 : index
      %17 = vector.load %arg6[%c0_12, %c0_13] : memref<16x512xbf16, #tpu.memory_space<vmem>>, vector<16x128xbf16>
      tpu.vector_store %arg6[%c0_12, %c0_13], %16 {strides = array<i32>} : memref<16x512xbf16, #tpu.memory_space<vmem>>, vector<16x128xbf16>,
      %18 = arith.mulf %14, %13 : vector<16x128xf32>
      %19 = arith.subf %18, %15 : vector<16x128xf32>
      %20 = arith.truncf %19 : vector<16x128xf32> to vector<16x128xbf16>
      %c0_14 = arith.constant 0 : index
      %c128 = arith.constant 128 : index
      %21 = vector.load %arg6[%c0_14, %c128] : memref<16x512xbf16, #tpu.memory_space<vmem>>, vector<16x128xbf16>
      tpu.vector_store %arg6[%c0_14, %c128], %20 {strides = array<i32>} : memref<16x512xbf16, #tpu.memory_space<vmem>>, vector<16x128xbf16>,
      %22 = arith.mulf %14, %19 : vector<16x128xf32>
      %23 = arith.subf %22, %13 : vector<16x128xf32>
      %24 = arith.truncf %23 : vector<16x128xf32> to vector<16x128xbf16>
      %c0_15 = arith.constant 0 : index
      %c256 = arith.constant 256 : index
      %25 = vector.load %arg6[%c0_15, %c256] : memref<16x512xbf16, #tpu.memory_space<vmem>>, vector<16x128xbf16>
      tpu.vector_store %arg6[%c0_15, %c256], %24 {strides = array<i32>} : memref<16x512xbf16, #tpu.memory_space<vmem>>, vector<16x128xbf16>,
      %26 = arith.mulf %14, %23 : vector<16x128xf32>
      %27 = arith.subf %26, %19 : vector<16x128xf32>
      %28 = arith.truncf %27 : vector<16x128xf32> to vector<16x128xbf16>
      %c0_16 = arith.constant 0 : index
      %c384 = arith.constant 384 : index
      %29 = vector.load %arg6[%c0_16, %c384] : memref<16x512xbf16, #tpu.memory_space<vmem>>, vector<16x128xbf16>
      tpu.vector_store %arg6[%c0_16, %c384], %28 {strides = array<i32>} : memref<16x512xbf16, #tpu.memory_space<vmem>>, vector<16x128xbf16>,
    } else {
    }
    %c0 = arith.constant 0 : index
    %c0_1 = arith.constant 0 : index
    %3 = vector.load %arg6[%c0, %c0_1] : memref<16x512xbf16, #tpu.memory_space<vmem>>, vector<16x512xbf16>
    %c0_2 = arith.constant 0 : index
    %c0_3 = arith.constant 0 : index
    %4 = vector.load %arg3[%c0_2, %c0_3] : memref<512x16xbf16, #tpu.memory_space<vmem>>, vector<512x16xbf16>
    %cst = arith.constant dense<0.000000e+00> : vector<16x16xf32>
    %5 = tpu.matmul %3, %4, %cst {dimension_numbers = #tpu.dot_dimension_numbers<[1], [0], [0], [1], [0, 0, 1, 1], [], []>} : vector<16x512xbf16>, vector<512x16xbf16>, vector<16x16xf32> -> vector<16x16xf32>
    %c0_4 = arith.constant 0 : index
    %c0_5 = arith.constant 0 : index
    %6 = vector.load %arg4[%c0_4, %c0_5] : memref<1x16xf32, #tpu.memory_space<vmem>>, vector<1x16xf32>
    %7 = vector.broadcast %6 : vector<1x16xf32> to vector<16x16xf32>
    %8 = arith.addf %5, %7 : vector<16x16xf32>
    %c0_6 = arith.constant 0 : index
    %c0_7 = arith.constant 0 : index
    %9 = vector.load %arg5[%c0_6, %c0_7] : memref<16x16xf32, #tpu.memory_space<vmem>>, vector<16x16xf32>
    tpu.vector_store %arg5[%c0_6, %c0_7], %8 {strides = array<i32>} : memref<16x16xf32, #tpu.memory_space<vmem>>, vector<16x16xf32>,
    return
  }
  func.func @transform_0(%arg0: i32, %arg1: i32) -> (i32, i32) {
    %c0_i32 = arith.constant 0 : i32
    %c0_i32_0 = arith.constant 0 : i32
    return %arg0, %c0_i32 : i32, i32
  }
  func.func @transform_1(%arg0: i32, %arg1: i32) -> (i32, i32) {
    %c0_i32 = arith.constant 0 : i32
    %c0_i32_0 = arith.constant 0 : i32
    return %c0_i32, %arg1 : i32, i32
  }
  func.func @transform_2(%arg0: i32, %arg1: i32) -> (i32, i32) {
    %c0_i32 = arith.constant 0 : i32
    %c0_i32_0 = arith.constant 0 : i32
    return %c0_i32, %arg1 : i32, i32
  }
  func.func @transform_3(%arg0: i32, %arg1: i32) -> (i32, i32) {
    %c0_i32 = arith.constant 0 : i32
    return %arg0, %arg1 : i32, i32
  }
}

</mosaic_0001>

<llo_original>
// kernel: cheby_kan_layer_2.1
$region0: #{cheby_kan_layer_2.1}
  #allocation0 [shape = 'u32[]', space=smem, size = 0x4, offset = 0x4, fixed_abs, tag = 'smem constant byte address 0x4 - core index']
  #allocation1 [shape = 'u32[72,128]{1,0:T(1,128)}', space=vmem, size = 0x9000, scoped, tag = 'internal scratch']
  #allocation2 [shape = 'bf16[16,512]{1,0:T(8,128)(2,1)}', space=vmem, size = 0x4000, scoped, tag = 'scratch operand']
  %s0 = inlined_call_operand.vmem [shape: f32[16,32], index: 0, kind: input, shape index: {}]
  %s1 = inlined_call_operand.vmem [shape: bf16[512,16], index: 1, kind: input, shape index: {}]
  %s2 = inlined_call_operand.vmem [shape: f32[1,16], index: 2, kind: input, shape index: {}]
  %s3 = inlined_call_operand.hbm [shape: f32[16,16], index: 3, kind: output, shape index: {}]
  %s4 = sld [smem:[#allocation0]]
  $region26: #{cheby_kan_layer_2.1} parent=0
    _
  %s6 = ssub.s32 1, %s4
  %s7 = scalar_select 0, %s6, %s4
  $region1: #{cheby_kan_layer_2.1} parent=0
    #allocation3 [shape = 'u8[8192]{0}', space=vmem, size = 0x2000, scoped, tag = 'output window, operand 0, single buffered']
    #allocation4 [shape = 's32[1]{0}', space=sflag, size = 0x4, scoped, tag = 'scoped memory for cheby_kan_layer_2.1']
    %8 = vsyncpa [#allocation4], 0
    // Predicated region
    $region2: #{cheby_kan_layer_2.1} parent=1 // pred_check
      _
    $region3: #{cheby_kan_layer_2.1} parent=1 // pred_check_branch
      %10 = sbr.rel (0) target = $region5
    $region4: #{cheby_kan_layer_2.1} parent=1 // pred_region
      _
    $region5: #{cheby_kan_layer_2.1} parent=1 // pred_fallthru
      _
    // Predicated region
    $region6: #{cheby_kan_layer_2.1} parent=1 // pred_check
      _
    $region7: #{cheby_kan_layer_2.1} parent=1 // pred_check_branch
      %12 = sbr.rel (0) target = $region9
    $region8: #{cheby_kan_layer_2.1} parent=1 // pred_region
      _
    $region9: #{cheby_kan_layer_2.1} parent=1 // pred_fallthru
      _
    // Predicated region
    $region10: #{cheby_kan_layer_2.1} parent=1 // pred_check
      _
    $region11: #{cheby_kan_layer_2.1} parent=1 // pred_check_branch
      %14 = sbr.rel (0) target = $region13
    $region12: #{cheby_kan_layer_2.1} parent=1 // pred_region
      _
    $region13: #{cheby_kan_layer_2.1} parent=1 // pred_fallthru
      _
    %p15 = scmp.eq.s32.totalorder 0, 0
    // Predicated region
    $region14: #{cheby_kan_layer_2.1} parent=1 // pred_check
      %p16 = pneg %p15
    $region15: #{cheby_kan_layer_2.1} parent=1 // pred_check_branch
      %18 = sbr.rel (%p16) target = $region17
    $region16: #{cheby_kan_layer_2.1} parent=1 // pred_region
      %v19 = vld [vmem:[%s0] sm:$0xff]
      %v20 = vld [vmem:[%s0 + $0x8] sm:$0xff]
      %v21 = vtanh.pop %v19
      %v22 = vtanh.pop %v20
      %vm23 = vcmask 261120
      %v24 = vsel %vm23, %v21, 0.0
      %v25 = vsel %vm23, %v22, 0.0
      %v26 = vadd.f32 %v24, %v24
      %v27 = vadd.f32 %v25, %v25
      %v28 = vpack.c.bf16 %v24, %v24
      %v29 = vpack.c.bf16 %v25, %v25
      %30 = vst [vmem:[#allocation2] sm:$0xf] %v28
      %31 = vst [vmem:[#allocation2 + $0x10] sm:$0xf] %v29
      %v32 = vmul.f32 %v26, %v24
      %v33 = vmul.f32 %v27, %v25
      %v34 = vsub.f32 %v32, 1.0
      %v35 = vsub.f32 %v33, 1.0
      %v36 = vpack.c.bf16 %v34, %v34
      %v37 = vpack.c.bf16 %v35, %v35
      %38 = vst [vmem:[#allocation2 + $0x4] sm:$0xf] %v36
      %39 = vst [vmem:[#allocation2 + $0x14] sm:$0xf] %v37
      %v40 = vmul.f32 %v26, %v34
      %v41 = vmul.f32 %v27, %v35
      %v42 = vsub.f32 %v40, %v24
      %v43 = vsub.f32 %v41, %v25
      %v44 = vpack.c.bf16 %v42, %v42
      %v45 = vpack.c.bf16 %v43, %v43
      %46 = vst [vmem:[#allocation2 + $0x8] sm:$0xf] %v44
      %47 = vst [vmem:[#allocation2 + $0x18] sm:$0xf] %v45
      %v48 = vmul.f32 %v26, %v42
      %v49 = vmul.f32 %v27, %v43
      %v50 = vsub.f32 %v48, %v34
      %v51 = vsub.f32 %v49, %v35
      %v52 = vpack.c.bf16 %v50, %v50
      %v53 = vpack.c.bf16 %v51, %v51
      %54 = vst [vmem:[#allocation2 + $0xc] sm:$0xf] %v52
      %55 = vst [vmem:[#allocation2 + $0x1c] sm:$0xf] %v53
    $region17: #{cheby_kan_layer_2.1} parent=1 // pred_fallthru
      _
    %v56 = vld [vmem:[#allocation2] sm:$0xff]
    %v57 = vld [vmem:[#allocation2 + $0x8] sm:$0xff]
    %v58 = vld [vmem:[#allocation2 + $0x10] sm:$0xff]
    %v59 = vld [vmem:[#allocation2 + $0x18] sm:$0xff]
    %v60 = vld [vmem:[%s1] sm:$0xf]
    %v61 = vld [vmem:[%s1 + $0x4] sm:$0xf]
    %v62 = vld [vmem:[%s1 + $0x8] sm:$0xf]
    %v63 = vld [vmem:[%s1 + $0xc] sm:$0xf]
    %v64 = vld [vmem:[%s1 + $0x10] sm:$0xf]
    %v65 = vld [vmem:[%s1 + $0x14] sm:$0xf]
    %v66 = vld [vmem:[%s1 + $0x18] sm:$0xf]
    %v67 = vld [vmem:[%s1 + $0x1c] sm:$0xf]
    %v68 = vld [vmem:[%s1 + $0x20] sm:$0xf]
    %v69 = vld [vmem:[%s1 + $0x24] sm:$0xf]
    %v70 = vld [vmem:[%s1 + $0x28] sm:$0xf]
    %v71 = vld [vmem:[%s1 + $0x2c] sm:$0xf]
    %v72 = vld [vmem:[%s1 + $0x30] sm:$0xf]
    %v73 = vld [vmem:[%s1 + $0x34] sm:$0xf]
    %v74 = vld [vmem:[%s1 + $0x38] sm:$0xf]
    %v75 = vld [vmem:[%s1 + $0x3c] sm:$0xf]
    %v76 = vld [vmem:[%s1 + $0x40] sm:$0xf]
    %v77 = vld [vmem:[%s1 + $0x44] sm:$0xf]
    %v78 = vld [vmem:[%s1 + $0x48] sm:$0xf]
    %v79 = vld [vmem:[%s1 + $0x4c] sm:$0xf]
    %v80 = vld [vmem:[%s1 + $0x50] sm:$0xf]
    %v81 = vld [vmem:[%s1 + $0x54] sm:$0xf]
    %v82 = vld [vmem:[%s1 + $0x58] sm:$0xf]
    %v83 = vld [vmem:[%s1 + $0x5c] sm:$0xf]
    %v84 = vld [vmem:[%s1 + $0x60] sm:$0xf]
    %v85 = vld [vmem:[%s1 + $0x64] sm:$0xf]
    %v86 = vld [vmem:[%s1 + $0x68] sm:$0xf]
    %v87 = vld [vmem:[%s1 + $0x6c] sm:$0xf]
    %v88 = vld [vmem:[%s1 + $0x70] sm:$0xf]
    %v89 = vld [vmem:[%s1 + $0x74] sm:$0xf]
    %v90 = vld [vmem:[%s1 + $0x78] sm:$0xf]
    %v91 = vld [vmem:[%s1 + $0x7c] sm:$0xf]
    %v92 = vld [vmem:[%s1 + $0x80] sm:$0xf]
    %v93 = vld [vmem:[%s1 + $0x84] sm:$0xf]
    %v94 = vld [vmem:[%s1 + $0x88] sm:$0xf]
    %v95 = vld [vmem:[%s1 + $0x8c] sm:$0xf]
    %v96 = vld [vmem:[%s1 + $0x90] sm:$0xf]
    %v97 = vld [vmem:[%s1 + $0x94] sm:$0xf]
    %v98 = vld [vmem:[%s1 + $0x98] sm:$0xf]
    %v99 = vld [vmem:[%s1 + $0x9c] sm:$0xf]
    %v100 = vld [vmem:[%s1 + $0xa0] sm:$0xf]
    %v101 = vld [vmem:[%s1 + $0xa4] sm:$0xf]
    %v102 = vld [vmem:[%s1 + $0xa8] sm:$0xf]
    %v103 = vld [vmem:[%s1 + $0xac] sm:$0xf]
    %v104 = vld [vmem:[%s1 + $0xb0] sm:$0xf]
    %v105 = vld [vmem:[%s1 + $0xb4] sm:$0xf]
    %v106 = vld [vmem:[%s1 + $0xb8] sm:$0xf]
    %v107 = vld [vmem:[%s1 + $0xbc] sm:$0xf]
    %v108 = vld [vmem:[%s1 + $0xc0] sm:$0xf]
    %v109 = vld [vmem:[%s1 + $0xc4] sm:$0xf]
    %v110 = vld [vmem:[%s1 + $0xc8] sm:$0xf]
    %v111 = vld [vmem:[%s1 + $0xcc] sm:$0xf]
    %v112 = vld [vmem:[%s1 + $0xd0] sm:$0xf]
    %v113 = vld [vmem:[%s1 + $0xd4] sm:$0xf]
    %v114 = vld [vmem:[%s1 + $0xd8] sm:$0xf]
    %v115 = vld [vmem:[%s1 + $0xdc] sm:$0xf]
    %v116 = vld [vmem:[%s1 + $0xe0] sm:$0xf]
    %v117 = vld [vmem:[%s1 + $0xe4] sm:$0xf]
    %v118 = vld [vmem:[%s1 + $0xe8] sm:$0xf]
    %v119 = vld [vmem:[%s1 + $0xec] sm:$0xf]
    %v120 = vld [vmem:[%s1 + $0xf0] sm:$0xf]
    %v121 = vld [vmem:[%s1 + $0xf4] sm:$0xf]
    %v122 = vld [vmem:[%s1 + $0xf8] sm:$0xf]
    %v123 = vld [vmem:[%s1 + $0xfc] sm:$0xf]
    %v124 = vld [vmem:[%s2] sm:$0x1]
    %v126 = vperm.slane %v124, 0
    %v132 = vunpack.c.l.b16 %v56
    %v133 = vunpack.c.h.b16 %v56
    %v134 = vunpack.c.l.b16 %v57
    %v135 = vunpack.c.h.b16 %v57
    %v136 = vunpack.c.l.b16 %v58
    %v137 = vunpack.c.h.b16 %v58
    %v138 = vunpack.c.l.b16 %v59
    %v139 = vunpack.c.h.b16 %v59
    %v140 = vpack.c.b16 %v136, %v132
    %v141 = vpack.c.b16 %v137, %v133
    %v142 = vpack.c.b16 %v138, %v134
    %v143 = vpack.c.b16 %v139, %v135
    %v212 = vunpack.c.l.b16 %v60
    %v213 = vunpack.c.l.b16 %v61
    %v214 = vunpack.c.l.b16 %v62
    %v215 = vunpack.c.l.b16 %v63
    %v216 = vunpack.c.l.b16 %v64
    %v217 = vunpack.c.l.b16 %v65
    %v218 = vunpack.c.l.b16 %v66
    %v219 = vunpack.c.l.b16 %v67
    %v220 = vunpack.c.l.b16 %v68
    %v221 = vunpack.c.l.b16 %v69
    %v222 = vunpack.c.l.b16 %v70
    %v223 = vunpack.c.l.b16 %v71
    %v224 = vunpack.c.l.b16 %v72
    %v225 = vunpack.c.l.b16 %v73
    %v226 = vunpack.c.l.b16 %v74
    %v227 = vunpack.c.l.b16 %v75
    %v228 = vunpack.c.l.b16 %v76
    %v229 = vunpack.c.l.b16 %v77
    %v230 = vunpack.c.l.b16 %v78
    %v231 = vunpack.c.l.b16 %v79
    %v232 = vunpack.c.l.b16 %v80
    %v233 = vunpack.c.l.b16 %v81
    %v234 = vunpack.c.l.b16 %v82
    %v235 = vunpack.c.l.b16 %v83
    %v236 = vunpack.c.l.b16 %v84
    %v237 = vunpack.c.l.b16 %v85
    %v238 = vunpack.c.l.b16 %v86
    %v239 = vunpack.c.l.b16 %v87
    %v240 = vunpack.c.l.b16 %v88
    %v241 = vunpack.c.l.b16 %v89
    %v242 = vunpack.c.l.b16 %v90
    %v243 = vunpack.c.l.b16 %v91
    %v244 = vunpack.c.l.b16 %v92
    %v245 = vunpack.c.l.b16 %v93
    %v246 = vunpack.c.l.b16 %v94
    %v247 = vunpack.c.l.b16 %v95
    %v248 = vunpack.c.l.b16 %v96
    %v249 = vunpack.c.l.b16 %v97
    %v250 = vunpack.c.l.b16 %v98
    %v251 = vunpack.c.l.b16 %v99
    %v252 = vunpack.c.l.b16 %v100
    %v253 = vunpack.c.l.b16 %v101
    %v254 = vunpack.c.l.b16 %v102
    %v255 = vunpack.c.l.b16 %v103
    %v256 = vunpack.c.l.b16 %v104
    %v257 = vunpack.c.l.b16 %v105
    %v258 = vunpack.c.l.b16 %v106
    %v259 = vunpack.c.l.b16 %v107
    %v260 = vunpack.c.l.b16 %v108
    %v261 = vunpack.c.l.b16 %v109
    %v262 = vunpack.c.l.b16 %v110
    %v263 = vunpack.c.l.b16 %v111
    %v264 = vunpack.c.l.b16 %v112
    %v265 = vunpack.c.l.b16 %v113
    %v266 = vunpack.c.l.b16 %v114
    %v267 = vunpack.c.l.b16 %v115
    %v268 = vunpack.c.l.b16 %v116
    %v269 = vunpack.c.l.b16 %v117
    %v270 = vunpack.c.l.b16 %v118
    %v271 = vunpack.c.l.b16 %v119
    %v272 = vunpack.c.l.b16 %v120
    %v273 = vunpack.c.l.b16 %v121
    %v274 = vunpack.c.l.b16 %v122
    %v275 = vunpack.c.l.b16 %v123
    %v276 = vpack.c.b16 %v213, %v212
    %v277 = vpack.c.b16 %v215, %v214
    %v278 = vpack.c.b16 %v217, %v216
    %v279 = vpack.c.b16 %v219, %v218
    %v280 = vpack.c.b16 %v221, %v220
    %v281 = vpack.c.b16 %v223, %v222
    %v282 = vpack.c.b16 %v225, %v224
    %v283 = vpack.c.b16 %v227, %v226
    %v284 = vpack.c.b16 %v229, %v228
    %v285 = vpack.c.b16 %v231, %v230
    %v286 = vpack.c.b16 %v233, %v232
    %v287 = vpack.c.b16 %v235, %v234
    %v288 = vpack.c.b16 %v237, %v236
    %v289 = vpack.c.b16 %v239, %v238
    %v290 = vpack.c.b16 %v241, %v240
    %v291 = vpack.c.b16 %v243, %v242
    %v292 = vpack.c.b16 %v245, %v244
    %v293 = vpack.c.b16 %v247, %v246
    %v294 = vpack.c.b16 %v249, %v248
    %v295 = vpack.c.b16 %v251, %v250
    %v296 = vpack.c.b16 %v253, %v252
    %v297 = vpack.c.b16 %v255, %v254
    %v298 = vpack.c.b16 %v257, %v256
    %v299 = vpack.c.b16 %v259, %v258
    %v300 = vpack.c.b16 %v261, %v260
    %v301 = vpack.c.b16 %v263, %v262
    %v302 = vpack.c.b16 %v265, %v264
    %v303 = vpack.c.b16 %v267, %v266
    %v304 = vpack.c.b16 %v269, %v268
    %v305 = vpack.c.b16 %v271, %v270
    %v306 = vpack.c.b16 %v273, %v272
    %v307 = vpack.c.b16 %v275, %v274
    %340 = vmatpush.bf16.msra.mxu0 %v283
    %341 = vmatpush.bf16.msra.mxu0 %v282
    %342 = vmatpush.bf16.msra.mxu0 %v281
    %343 = vmatpush.bf16.msra.mxu0 %v280
    %344 = vmatpush.bf16.msra.mxu0 %v279
    %345 = vmatpush.bf16.msra.mxu0 %v278
    %346 = vmatpush.bf16.msra.mxu0 %v277
    %347 = vmatpush.bf16.msra.mxu0 %v276
    %348 = vmatmul.bf16.gmra.mxu0 %v140
    %v349 = vpop.f32.mrf.mxu0
    %v350 = vadd.f32 %v126, %v349
    %v351 = vpop.f32.mrf.mxu0
    %v352 = vadd.f32 %v126, %v351
    %353 = vdwg.mxu0
    %354 = vmatpush.bf16.msra.mxu0 %v291
    %355 = vmatpush.bf16.msra.mxu0 %v290
    %356 = vmatpush.bf16.msra.mxu0 %v289
    %357 = vmatpush.bf16.msra.mxu0 %v288
    %358 = vmatpush.bf16.msra.mxu0 %v287
    %359 = vmatpush.bf16.msra.mxu0 %v286
    %360 = vmatpush.bf16.msra.mxu0 %v285
    %361 = vmatpush.bf16.msra.mxu0 %v284
    %362 = vmatmul.bf16.gmra.mxu0 %v141
    %v363 = vpop.f32.mrf.mxu0
    %v364 = vadd.f32 %v350, %v363
    %v365 = vpop.f32.mrf.mxu0
    %v366 = vadd.f32 %v352, %v365
    %367 = vdwg.mxu0
    %368 = vmatpush.bf16.msra.mxu0 %v299
    %369 = vmatpush.bf16.msra.mxu0 %v298
    %370 = vmatpush.bf16.msra.mxu0 %v297
    %371 = vmatpush.bf16.msra.mxu0 %v296
    %372 = vmatpush.bf16.msra.mxu0 %v295
    %373 = vmatpush.bf16.msra.mxu0 %v294
    %374 = vmatpush.bf16.msra.mxu0 %v293
    %375 = vmatpush.bf16.msra.mxu0 %v292
    %376 = vmatmul.bf16.gmra.mxu0 %v142
    %v377 = vpop.f32.mrf.mxu0
    %v378 = vadd.f32 %v364, %v377
    %v379 = vpop.f32.mrf.mxu0
    %v380 = vadd.f32 %v366, %v379
    %381 = vdwg.mxu0
    %382 = vmatpush.bf16.msra.mxu0 %v307
    %383 = vmatpush.bf16.msra.mxu0 %v306
    %384 = vmatpush.bf16.msra.mxu0 %v305
    %385 = vmatpush.bf16.msra.mxu0 %v304
    %386 = vmatpush.bf16.msra.mxu0 %v303
    %387 = vmatpush.bf16.msra.mxu0 %v302
    %388 = vmatpush.bf16.msra.mxu0 %v301
    %389 = vmatpush.bf16.msra.mxu0 %v300
    %390 = vmatmul.bf16.gmra.mxu0 %v143
    %v391 = vpop.f32.mrf.mxu0
    %v392 = vadd.f32 %v378, %v391
    %v393 = vpop.f32.mrf.mxu0
    %v394 = vadd.f32 %v380, %v393
    %395 = vdwg.mxu0
    %vm396 = vcmask 130048
    %397 = vst.msk [vmem:[#allocation3] sm:$0xff] %vm396, %v392
    %398 = vst.msk [vmem:[#allocation3 + $0x8] sm:$0xff] %vm396, %v394
    // Predicated region
    $region18: #{cheby_kan_layer_2.1} parent=1 // pred_check
      _
    $region19: #{cheby_kan_layer_2.1} parent=1 // pred_check_branch
      %400 = sbr.rel (0) target = $region21
    $region20: #{cheby_kan_layer_2.1} parent=1 // pred_region
      %402 = vsyncadd [#allocation4], 0
      %s403 = sshll.u32 [#allocation3], 4
      %s404 = int_to_ptr.vmem [resolvable:$true] %s403
      %s405 = sshll.u32 %s3, 4
      %s406 = int_to_ptr.hbm [resolvable:$true] %s405
      %411 = dma.vmem_to_hbm [thread:$0]  %s404, 256, %s406, [#allocation4], 128, 128, 8
    $region21: #{cheby_kan_layer_2.1} parent=1 // pred_fallthru
      _
    // Predicated region
    $region22: #{cheby_kan_layer_2.1} parent=1 // pred_check
      _
    $region23: #{cheby_kan_layer_2.1} parent=1 // pred_check_branch
      %413 = sbr.rel (0) target = $region25
    $region24: #{cheby_kan_layer_2.1} parent=1 // pred_region
      %415 = dma.done [#allocation4], 256
    $region25: #{cheby_kan_layer_2.1} parent=1 // pred_fallthru
      _
    %416 = vsyncpa [#allocation4], 1

</llo_original>
